<compile_context>
chip_gen: v7x
topology: tpu7x:2x2x1
jax: 0.10.0
libtpu: 0.0.40
codegen_flags: <defaults>
</compile_context>

<pallas_src>
import functools

import jax
import jax.numpy as jnp
from jax.experimental import pallas as pl
from jax.experimental.pallas import tpu as pltpu

LANES = 128
SUBLANES = 8


def _device_kind() -> str:
    try:
        return jax.devices()[0].device_kind.lower()
    except Exception:
        return ""


def _default_num_splits() -> int:
    # Two TensorCores per device on v7x (and megacore v4/v5p): a "parallel"
    # leading grid axis lets each TC stream half the data.  Single-TC chips
    # (v5e/v6e) skip the extra split (it is just a serial loop there).
    kind = _device_kind()
    return 2 if any(t in kind for t in ("v7", "v4", "v5p")) else 1


def _target_tile_bytes() -> int:
    # ~2 MiB per input per buffer hits ~85%+ of HBM roofline on v5e/v6e while
    # staying well inside v5e's 16 MiB scoped-VMEM default (8 MiB total,
    # double-buffered, 2 inputs).  v7x's ~3.2 TB/s per-TC bandwidth makes the
    # fixed per-step overhead relatively larger, so use ~4 MiB tiles there
    # (16 MiB total, still under the 32 MiB scoped default).
    return (4 << 20) if "v7" in _device_kind() else (2 << 20)


def _rmse_partial_kernel(x_ref, y_ref, out_ref, *, rows_valid, num_tiles,
                         tiles_per_split, block_rows):
    """Accumulate per-split partial sums of (x - y)^2 into an (8,128) block."""
    s = pl.program_id(0)   # split index (parallel)
    i = pl.program_id(1)   # row-tile index within split (arbitrary/reduction)

    @pl.when(i == 0)
    def _():
        out_ref[...] = jnp.zeros_like(out_ref)

    # Unclamped global row-tile index.  The input index_map clamps the DMA'd
    # block; here we decide whether to compute, mask, or skip.
    tile = s * tiles_per_split + i
    row0 = tile * block_rows
    in_range = tile < num_tiles                     # overflow tiles: skip compute
    full = row0 + block_rows <= rows_valid          # interior tiles: no mask

    def _accumulate(d):
        d2 = d * d
        # (block_rows,128) -> (block_rows//8, 8, 128); sum over the leading
        # axis is pure vreg (VPU) adds -- no cross-lane XLU reduce here.
        out_ref[...] += jnp.sum(
            d2.reshape(block_rows // SUBLANES, SUBLANES, LANES), axis=0)

    @pl.when(jnp.logical_and(in_range, full))
    def _fast():
        d = x_ref[...].astype(jnp.float32) - y_ref[...].astype(jnp.float32)
        _accumulate(d)

    @pl.when(jnp.logical_and(in_range, jnp.logical_not(full)))
    def _masked():
        row_idx = row0 + jax.lax.broadcasted_iota(
            jnp.int32, (block_rows, LANES), 0)
        valid = row_idx < rows_valid
        d = x_ref[...].astype(jnp.float32) - y_ref[...].astype(jnp.float32)
        # Mask BEFORE squaring: rows past the array come from a clamped DMA
        # and can hold garbage (potentially Inf/NaN).
        d = jnp.where(valid, d, 0.0)
        _accumulate(d)


def rmse_loss(x, y, epsilon: float = 0.0001, *, min_pallas_elems: int = 32768,
              splits=None):
    assert x.shape == y.shape, "x and y must have the same shape"
    n_total = x.size

    # Small-input bypass: kernel launch / pipeline setup dwarfs the math.
    if n_total < min_pallas_elems:
        d = x.astype(jnp.float32) - y.astype(jnp.float32)
        mse = jnp.mean(d * d)
        mse = jnp.where(mse == 0.0, mse + jnp.float32(epsilon), mse)
        return jnp.sqrt(mse)

    # Flatten (free for contiguous arrays).  Keep the original dtype in HBM;
    # the kernel upcasts per-tile, halving input traffic for bf16/f16 inputs.
    xf = jnp.ravel(x)
    yf = jnp.ravel(y)

    itemsize_x = jnp.dtype(x.dtype).itemsize
    itemsize_y = jnp.dtype(y.dtype).itemsize
    min_item = min(itemsize_x, itemsize_y)
    max_item = max(itemsize_x, itemsize_y)

    # Pad only to the narrowest dtype's packed tile (8*128 f32, 16*128 bf16,
    # 32*128 int8); padded entries are zero in both inputs -> contribute 0.
    row_align = max(SUBLANES, 32 // min_item)
    pad = (-n_total) % (row_align * LANES)
    if pad:
        xf = jnp.pad(xf, (0, pad))
        yf = jnp.pad(yf, (0, pad))

    rows = xf.size // LANES                       # multiple of row_align
    x2d = xf.reshape(rows, LANES)
    y2d = yf.reshape(rows, LANES)

    # Tile size: biggest that comfortably fits the scoped-VMEM budget.
    target_rows = _target_tile_bytes() // (LANES * max_item)
    target_rows = max(row_align, (target_rows // row_align) * row_align)
    block_rows = min(target_rows, rows)           # multiple of row_align

    num_tiles = -(-rows // block_rows)            # cdiv
    req_splits = _default_num_splits() if splits is None else int(splits)
    num_splits = max(1, min(req_splits, num_tiles))
    tiles_per_split = -(-num_tiles // num_splits)
    max_block = num_tiles - 1

    def in_map(s, i):
        # Clamp so the DMA never walks past the array; the kernel skips the
        # compute for clamped overflow tiles and masks the partial last tile.
        return (jnp.minimum(s * tiles_per_split + i, max_block), 0)

    kernel = functools.partial(
        _rmse_partial_kernel,
        rows_valid=rows,
        num_tiles=num_tiles,
        tiles_per_split=tiles_per_split,
        block_rows=block_rows,
    )

    cost = pl.CostEstimate(
        flops=3 * n_total,
        transcendentals=0,
        bytes_accessed=n_total * (itemsize_x + itemsize_y)
        + num_splits * SUBLANES * LANES * 4,
    )

    partials = pl.pallas_call(
        kernel,
        out_shape=jax.ShapeDtypeStruct((num_splits * SUBLANES, LANES),
                                       jnp.float32),
        grid_spec=pltpu.PrefetchScalarGridSpec(
            num_scalar_prefetch=0,
            grid=(num_splits, tiles_per_split),
            in_specs=[
                pl.BlockSpec((block_rows, LANES), in_map),
                pl.BlockSpec((block_rows, LANES), in_map),
            ],
            out_specs=pl.BlockSpec((SUBLANES, LANES), lambda s, i: (s, 0)),
        ),
        compiler_params=pltpu.CompilerParams(
            dimension_semantics=("parallel", "arbitrary"),
        ),
        cost_estimate=cost,
    )(x2d, y2d)

    # Tiny finalization on a (num_splits*8, 128) array: one reduce + scalars.
    total = jnp.sum(partials)
    mse = total / jnp.float32(n_total)
    mse = jnp.where(mse == 0.0, mse + jnp.float32(epsilon), mse)
    return jnp.sqrt(mse)


def _reference(x, y, epsilon=1e-4):
    mse = jnp.mean((x.astype(jnp.float32) - y.astype(jnp.float32)) ** 2)
    mse = jnp.where(mse == 0.0, mse + jnp.float32(epsilon), mse)
    return jnp.sqrt(mse)


if __name__ == "__main__":
    key = jax.random.PRNGKey(0)
    kx, ky = jax.random.split(key)

    # Module-consistent small shape: batch=2, channels=4, spatial=16x16.
    # Force the Pallas path here so the kernel itself is exercised (the
    # default wrapper bypasses such tiny inputs for performance).
    x = jax.random.normal(kx, (2, 4, 16, 16), dtype=jnp.float32)
    y = jax.random.normal(ky, (2, 4, 16, 16), dtype=jnp.float32)
    loss = rmse_loss(x, y, min_pallas_elems=0)
    jax.block_until_ready(loss)
    ref = _reference(x, y)
    assert jnp.allclose(loss, ref, rtol=1e-5, atol=1e-6), (loss, ref)

    # Default path (small-input bypass) gives the same answer.
    assert jnp.allclose(rmse_loss(x, y), ref, rtol=1e-5, atol=1e-6)

    # Degenerate case: identical inputs -> mse == 0 -> sqrt(epsilon).
    loss_zero = rmse_loss(x, x, min_pallas_elems=0)
    jax.block_until_ready(loss_zero)
    assert jnp.allclose(loss_zero, jnp.sqrt(jnp.float32(1e-4)), rtol=1e-5)

    # Multi-tile path: exercises the unmasked fast path on interior tiles and
    # the masked partial last tile (rows not a multiple of block_rows).
    k1, k2 = jax.random.split(ky)
    xb = jax.random.normal(k1, (5, 4, 260, 257), dtype=jnp.float32)
    yb = jax.random.normal(k2, (5, 4, 260, 257), dtype=jnp.float32)
    assert jnp.allclose(rmse_loss(xb, yb), _reference(xb, yb),
                        rtol=1e-4, atol=1e-6)

    # Forced 2-way split exercises the clamped / overflow-tile skip path
    # (also what v7x uses by default).
    assert jnp.allclose(rmse_loss(xb, yb, splits=2), _reference(xb, yb),
                        rtol=1e-4, atol=1e-6)

    # bf16 inputs stay bf16 in HBM; kernel upcasts per-tile (16-row packing).
    xh = xb.astype(jnp.bfloat16)
    yh = yb.astype(jnp.bfloat16)
    assert jnp.allclose(rmse_loss(xh, yh), _reference(xh, yh),
                        rtol=1e-2, atol=1e-3)

    # Tail-pad path (size not a multiple of 8*128), single-tile grid.
    xo = jax.random.normal(k1, (3, 5, 17, 13), dtype=jnp.float32)
    yo = jax.random.normal(k2, (3, 5, 17, 13), dtype=jnp.float32)
    assert jnp.allclose(rmse_loss(xo, yo, min_pallas_elems=0),
                        _reference(xo, yo), rtol=1e-5, atol=1e-6)

    print("KERNEL_OK")
</pallas_src>

<mosaic_0001>
module attributes {stable_mosaic.version = 11 : i64} {
  func.func @_rmse_partial_kernel(%arg0: i32, %arg1: i32, %arg2: memref<16x128xf32, #tpu.memory_space<vmem>>, %arg3: memref<16x128xf32, #tpu.memory_space<vmem>>, %arg4: memref<8x128xf32, #tpu.memory_space<vmem>>) attributes {dimension_semantics = [#tpu.dimension_semantics<parallel>, #tpu.dimension_semantics<arbitrary>], iteration_bounds = array<i64: 1, 1>, scalar_prefetch = 0 : i64, scratch_operands = 0 : i64, tpu.core_type = #tpu.core_type<tc>, window_params = [{transform_indices = @transform_0, window_bounds = array<i64: 16, 128>}, {transform_indices = @transform_1, window_bounds = array<i64: 16, 128>}, {transform_indices = @transform_2, window_bounds = array<i64: 8, 128>}]} {
    %c0_i32 = arith.constant 0 : i32
    %0 = arith.cmpi eq, %arg1, %c0_i32 : i32
    %1 = arith.extui %0 : i1 to i32
    %c0_i32_0 = arith.constant 0 : i32
    %2 = arith.cmpi ne, %1, %c0_i32_0 : i32
    scf.if %2 {
      %cst = arith.constant 0.000000e+00 : f32
      %16 = vector.broadcast %cst : f32 to vector<8x128xf32>
      %c0 = arith.constant 0 : index
      %c0_6 = arith.constant 0 : index
      %17 = vector.load %arg4[%c0, %c0_6] : memref<8x128xf32, #tpu.memory_space<vmem>>, vector<8x128xf32>
      tpu.vector_store %arg4[%c0, %c0_6], %16 {strides = array<i32>} : memref<8x128xf32, #tpu.memory_space<vmem>>, vector<8x128xf32>,
    } else {
    }
    %c1_i32 = arith.constant 1 : i32
    %3 = arith.muli %arg0, %c1_i32 : i32
    %4 = arith.addi %3, %arg1 : i32
    %c16_i32 = arith.constant 16 : i32
    %5 = arith.muli %4, %c16_i32 : i32
    %c1_i32_1 = arith.constant 1 : i32
    %6 = arith.cmpi slt, %4, %c1_i32_1 : i32
    %c16_i32_2 = arith.constant 16 : i32
    %7 = arith.addi %5, %c16_i32_2 : i32
    %c16_i32_3 = arith.constant 16 : i32
    %8 = arith.cmpi sle, %7, %c16_i32_3 : i32
    %9 = arith.andi %6, %8 : i1
    %10 = arith.extui %9 : i1 to i32
    %c0_i32_4 = arith.constant 0 : i32
    %11 = arith.cmpi ne, %10, %c0_i32_4 : i32
    scf.if %11 {
      %c0 = arith.constant 0 : index
      %c0_6 = arith.constant 0 : index
      %16 = vector.load %arg2[%c0, %c0_6] : memref<16x128xf32, #tpu.memory_space<vmem>>, vector<16x128xf32>
      %c0_7 = arith.constant 0 : index
      %c0_8 = arith.constant 0 : index
      %17 = vector.load %arg3[%c0_7, %c0_8] : memref<16x128xf32, #tpu.memory_space<vmem>>, vector<16x128xf32>
      %18 = arith.subf %16, %17 : vector<16x128xf32>
      %19 = arith.mulf %18, %18 : vector<16x128xf32>
      %c0_9 = arith.constant 0 : index
      %c0_10 = arith.constant 0 : index
      %20 = vector.load %arg4[%c0_9, %c0_10] : memref<8x128xf32, #tpu.memory_space<vmem>>, vector<8x128xf32>
      %21 = vector.shape_cast %19 : vector<16x128xf32> to vector<2x8x128xf32>
      %cst = arith.constant dense<0.000000e+00> : vector<8x128xf32>
      %22 = vector.multi_reduction <add>, %21, %cst [0] : vector<2x8x128xf32> to vector<8x128xf32>
      %23 = arith.addf %20, %22 : vector<8x128xf32>
      %c0_11 = arith.constant 0 : index
      %c0_12 = arith.constant 0 : index
      %24 = vector.load %arg4[%c0_11, %c0_12] : memref<8x128xf32, #tpu.memory_space<vmem>>, vector<8x128xf32>
      tpu.vector_store %arg4[%c0_11, %c0_12], %23 {strides = array<i32>} : memref<8x128xf32, #tpu.memory_space<vmem>>, vector<8x128xf32>,
    } else {
    }
    %true = arith.constant true
    %12 = arith.xori %8, %true : i1
    %13 = arith.andi %6, %12 : i1
    %14 = arith.extui %13 : i1 to i32
    %c0_i32_5 = arith.constant 0 : i32
    %15 = arith.cmpi ne, %14, %c0_i32_5 : i32
    scf.if %15 {
      %16 = tpu.iota {dimensions = array<i32: 0>} : vector<16x128xi32>
      %17 = vector.broadcast %5 : i32 to vector<16x128xi32>
      %18 = arith.addi %17, %16 : vector<16x128xi32>
      %c16_i32_6 = arith.constant 16 : i32
      %19 = vector.broadcast %c16_i32_6 : i32 to vector<16x128xi32>
      %20 = arith.cmpi slt, %18, %19 : vector<16x128xi32>
      %c0 = arith.constant 0 : index
      %c0_7 = arith.constant 0 : index
      %21 = vector.load %arg2[%c0, %c0_7] : memref<16x128xf32, #tpu.memory_space<vmem>>, vector<16x128xf32>
      %c0_8 = arith.constant 0 : index
      %c0_9 = arith.constant 0 : index
      %22 = vector.load %arg3[%c0_8, %c0_9] : memref<16x128xf32, #tpu.memory_space<vmem>>, vector<16x128xf32>
      %23 = arith.subf %21, %22 : vector<16x128xf32>
      %cst = arith.constant 0.000000e+00 : f32
      %24 = vector.broadcast %cst : f32 to vector<16x128xf32>
      %25 = arith.select %20, %23, %24 : vector<16x128xi1>, vector<16x128xf32>
      %26 = arith.mulf %25, %25 : vector<16x128xf32>
      %c0_10 = arith.constant 0 : index
      %c0_11 = arith.constant 0 : index
      %27 = vector.load %arg4[%c0_10, %c0_11] : memref<8x128xf32, #tpu.memory_space<vmem>>, vector<8x128xf32>
      %28 = vector.shape_cast %26 : vector<16x128xf32> to vector<2x8x128xf32>
      %cst_12 = arith.constant dense<0.000000e+00> : vector<8x128xf32>
      %29 = vector.multi_reduction <add>, %28, %cst_12 [0] : vector<2x8x128xf32> to vector<8x128xf32>
      %30 = arith.addf %27, %29 : vector<8x128xf32>
      %c0_13 = arith.constant 0 : index
      %c0_14 = arith.constant 0 : index
      %31 = vector.load %arg4[%c0_13, %c0_14] : memref<8x128xf32, #tpu.memory_space<vmem>>, vector<8x128xf32>
      tpu.vector_store %arg4[%c0_13, %c0_14], %30 {strides = array<i32>} : memref<8x128xf32, #tpu.memory_space<vmem>>, vector<8x128xf32>,
    } else {
    }
    return
  }
  func.func @transform_0(%arg0: i32, %arg1: i32) -> (i32, i32) {
    %c1_i32 = arith.constant 1 : i32
    %0 = arith.muli %arg0, %c1_i32 : i32
    %1 = arith.addi %0, %arg1 : i32
    %c0_i32 = arith.constant 0 : i32
    %2 = arith.minsi %1, %c0_i32 : i32
    %c0_i32_0 = arith.constant 0 : i32
    %c0_i32_1 = arith.constant 0 : i32
    return %2, %c0_i32_0 : i32, i32
  }
  func.func @transform_1(%arg0: i32, %arg1: i32) -> (i32, i32) {
    %c1_i32 = arith.constant 1 : i32
    %0 = arith.muli %arg0, %c1_i32 : i32
    %1 = arith.addi %0, %arg1 : i32
    %c0_i32 = arith.constant 0 : i32
    %2 = arith.minsi %1, %c0_i32 : i32
    %c0_i32_0 = arith.constant 0 : i32
    %c0_i32_1 = arith.constant 0 : i32
    return %2, %c0_i32_0 : i32, i32
  }
  func.func @transform_2(%arg0: i32, %arg1: i32) -> (i32, i32) {
    %c0_i32 = arith.constant 0 : i32
    %c0_i32_0 = arith.constant 0 : i32
    return %arg0, %c0_i32 : i32, i32
  }
}

</mosaic_0001>

<llo_original>
// kernel: tpu_custom_call.1
$region0: #{tpu_custom_call.1}
  #allocation0 [shape = 'u32[]', space=smem, size = 0x4, offset = 0x4, fixed_abs, tag = 'smem constant byte address 0x4 - core index']
  #allocation1 [shape = 'u32[144,128]{1,0:T(1,128)}', space=vmem, size = 0x12000, scoped, tag = 'internal scratch']
  %s0 = inlined_call_operand.hbm [shape: f32[16,128], index: 0, kind: input, shape index: {}]
  %s1 = inlined_call_operand.hbm [shape: f32[16,128], index: 1, kind: input, shape index: {}]
  %s2 = inlined_call_operand.hbm [shape: f32[8,128], index: 2, kind: output, shape index: {}]
  %s3 = sld [smem:[#allocation0]]
  $region38: #{tpu_custom_call.1} parent=0
    _
  %s5 = ssub.s32 1, %s3
  %s6 = scalar_select 0, %s5, %s3
  $region1: #{tpu_custom_call.1} parent=0
    #allocation2 [shape = 'u8[8192]{0}', space=vmem, size = 0x2000, scoped, tag = 'input window, operand 0, single buffered']
    #allocation3 [shape = 's32[1]{0}', space=sflag, size = 0x4, scoped, tag = 'scoped memory for tpu_custom_call.1']
    #allocation4 [shape = 's32[1]{0}', space=sflag, size = 0x4, scoped, tag = 'scoped memory for tpu_custom_call.1']
    #allocation5 [shape = 'u8[8192]{0}', space=vmem, size = 0x2000, scoped, tag = 'input window, operand 1, single buffered']
    #allocation6 [shape = 's32[1]{0}', space=sflag, size = 0x4, scoped, tag = 'scoped memory for tpu_custom_call.1']
    #allocation7 [shape = 'u8[4096]{0}', space=vmem, size = 0x1000, scoped, tag = 'output window, operand 0, single buffered']
    %7 = vsyncpa [#allocation3], 0
    %8 = vsyncpa [#allocation6], 0
    %9 = vsyncpa [#allocation4], 0
    // Predicated region
    $region2: #{tpu_custom_call.1} parent=1 // pred_check
      _
    $region3: #{tpu_custom_call.1} parent=1 // pred_check_branch
      %11 = sbr.rel (0) target = $region5
    $region4: #{tpu_custom_call.1} parent=1 // pred_region
      %s12 = sadd.s32 0, 0
      %p13 = scmp.lt.s32.totalorder %s12, 0
      %s14 = scalar_select %p13, %s12, 0
      %s15 = smul.u32 2, %s14
      %s17 = ssub.s32 256, 256
      %18 = vsyncadd [#allocation3], %s17
      %s19 = smul.addr %s15, 128
      %s20 = scalar_lea.hbm %s0, %s19
      %s21 = sshll.u32 [#allocation2], 4
      %s22 = int_to_ptr.vmem [resolvable:$true] %s21
      %27 = dma.hbm_to_vmem [thread:$0]  %s20, 256, %s22, [#allocation3], 128, 128, 8
    $region5: #{tpu_custom_call.1} parent=1 // pred_fallthru
      _
    // Predicated region
    $region6: #{tpu_custom_call.1} parent=1 // pred_check
      _
    $region7: #{tpu_custom_call.1} parent=1 // pred_check_branch
      %29 = sbr.rel (0) target = $region9
    $region8: #{tpu_custom_call.1} parent=1 // pred_region
      %s30 = sadd.s32 0, 0
      %p31 = scmp.lt.s32.totalorder %s30, 0
      %s32 = scalar_select %p31, %s30, 0
      %s33 = smul.u32 2, %s32
      %s35 = ssub.s32 256, 256
      %36 = vsyncadd [#allocation6], %s35
      %s37 = smul.addr %s33, 128
      %s38 = scalar_lea.hbm %s1, %s37
      %s39 = sshll.u32 [#allocation5], 4
      %s40 = int_to_ptr.vmem [resolvable:$true] %s39
      %45 = dma.hbm_to_vmem [thread:$0]  %s38, 256, %s40, [#allocation6], 128, 128, 8
    $region9: #{tpu_custom_call.1} parent=1 // pred_fallthru
      _
    // Predicated region
    $region10: #{tpu_custom_call.1} parent=1 // pred_check
      _
    $region11: #{tpu_custom_call.1} parent=1 // pred_check_branch
      %47 = sbr.rel (0) target = $region13
    $region12: #{tpu_custom_call.1} parent=1 // pred_region
      %48 = dma.done [#allocation3], 256
    $region13: #{tpu_custom_call.1} parent=1 // pred_fallthru
      _
    // Predicated region
    $region14: #{tpu_custom_call.1} parent=1 // pred_check
      _
    $region15: #{tpu_custom_call.1} parent=1 // pred_check_branch
      %50 = sbr.rel (0) target = $region17
    $region16: #{tpu_custom_call.1} parent=1 // pred_region
      %51 = dma.done [#allocation6], 256
    $region17: #{tpu_custom_call.1} parent=1 // pred_fallthru
      _
    %s52 = sadd.s32 0, 0
    %p53 = scmp.lt.s32.totalorder %s52, 0
    %s54 = scalar_select %p53, %s52, 0
    %s55 = smul.u32 2, %s54
    %s56 = sadd.s32 0, 0
    %p57 = scmp.lt.s32.totalorder %s56, 0
    %s58 = scalar_select %p57, %s56, 0
    %s59 = smul.u32 2, %s58
    %p60 = scmp.eq.s32.totalorder 0, 0
    // Predicated region
    $region18: #{tpu_custom_call.1} parent=1 // pred_check
      %p61 = pneg %p60
    $region19: #{tpu_custom_call.1} parent=1 // pred_check_branch
      %63 = sbr.rel (%p61) target = $region21
    $region20: #{tpu_custom_call.1} parent=1 // pred_region
      %64 = vst [vmem:[#allocation7] sm:$0xff] 0.0
    $region21: #{tpu_custom_call.1} parent=1 // pred_fallthru
      _
    %s65 = sadd.s32 0, 0
    %s66 = smul.u32 %s65, 16
    %p67 = scmp.lt.s32.totalorder %s65, 1
    %s68 = sadd.s32 %s66, 16
    %p69 = scmp.le.s32.totalorder %s68, 16
    %p70 = pnand %p67, %p69
    %p71 = pneg %p70
    // Predicated region
    $region22: #{tpu_custom_call.1} parent=1 // pred_check
      _
    $region23: #{tpu_custom_call.1} parent=1 // pred_check_branch
      %73 = sbr.rel (%p70) target = $region25
    $region24: #{tpu_custom_call.1} parent=1 // pred_region
      %v74 = vld [vmem:[#allocation2] sm:$0xff]
      %v75 = vld [vmem:[#allocation2 + $0x8] sm:$0xff]
      %v76 = vld [vmem:[#allocation5] sm:$0xff]
      %v77 = vld [vmem:[#allocation5 + $0x8] sm:$0xff]
      %v78 = vsub.f32 %v74, %v76
      %v79 = vsub.f32 %v75, %v77
      %v80 = vmul.f32 %v78, %v78
      %v81 = vmul.f32 %v79, %v79
      %v82 = vld [vmem:[#allocation7] sm:$0xff]
      %v83 = vadd.f32 %v80, %v81
      %v84 = vadd.f32 %v82, %v83
      %85 = vst [vmem:[#allocation7] sm:$0xff] %v84
    $region25: #{tpu_custom_call.1} parent=1 // pred_fallthru
      _
    %p86 = scmp.gt.s32.totalorder %s68, 16
    %p87 = pnand %p67, %p86
    %p88 = pneg %p87
    // Predicated region
    $region26: #{tpu_custom_call.1} parent=1 // pred_check
      _
    $region27: #{tpu_custom_call.1} parent=1 // pred_check_branch
      %90 = sbr.rel (%p87) target = $region29
    $region28: #{tpu_custom_call.1} parent=1 // pred_region
      %v91 = vlaneseq
      %v92 = vshrl.u32 %v91, 7
      %v93 = vadd.s32 %v92, 8
      %v94 = vstv %s66
      %v95 = vadd.s32 %v94, %v92
      %v96 = vadd.s32 %v94, %v93
      %vm97 = vcmp.lt.s32.totalorder %v95, 16
      %vm98 = vcmp.lt.s32.totalorder %v96, 16
      %v99 = vld [vmem:[#allocation2] sm:$0xff]
      %v100 = vld [vmem:[#allocation2 + $0x8] sm:$0xff]
      %v101 = vld [vmem:[#allocation5] sm:$0xff]
      %v102 = vld [vmem:[#allocation5 + $0x8] sm:$0xff]
      %v103 = vsub.f32 %v99, %v101
      %v104 = vsub.f32 %v100, %v102
      %v105 = vsel %vm97, %v103, 0.0
      %v106 = vsel %vm98, %v104, 0.0
      %v107 = vmul.f32 %v105, %v105
      %v108 = vmul.f32 %v106, %v106
      %v109 = vld [vmem:[#allocation7] sm:$0xff]
      %v110 = vadd.f32 %v107, %v108
      %v111 = vadd.f32 %v109, %v110
      %112 = vst [vmem:[#allocation7] sm:$0xff] %v111
    $region29: #{tpu_custom_call.1} parent=1 // pred_fallthru
      _
    // Predicated region
    $region30: #{tpu_custom_call.1} parent=1 // pred_check
      _
    $region31: #{tpu_custom_call.1} parent=1 // pred_check_branch
      %114 = sbr.rel (0) target = $region33
    $region32: #{tpu_custom_call.1} parent=1 // pred_region
      %s116 = ssub.s32 128, 128
      %117 = vsyncadd [#allocation4], %s116
      %s119 = sshll.u32 [#allocation7], 4
      %s120 = int_to_ptr.vmem [resolvable:$true] %s119
      %122 = dma.vmem_to_hbm [thread:$0]  %s120, 128, %s2, [#allocation4]
    $region33: #{tpu_custom_call.1} parent=1 // pred_fallthru
      _
    // Predicated region
    $region34: #{tpu_custom_call.1} parent=1 // pred_check
      _
    $region35: #{tpu_custom_call.1} parent=1 // pred_check_branch
      %124 = sbr.rel (0) target = $region37
    $region36: #{tpu_custom_call.1} parent=1 // pred_region
      %125 = dma.done [#allocation4], 128
    $region37: #{tpu_custom_call.1} parent=1 // pred_fallthru
      _
    %126 = vsyncpa [#allocation3], 1
    %127 = vsyncpa [#allocation6], 1
    %128 = vsyncpa [#allocation4], 1

</llo_original>
